<compile_context>
chip_gen: v7x
topology: tpu7x:2x2x1
jax: 0.10.0
libtpu: 0.0.40
codegen_flags: <defaults>
</compile_context>

<pallas_src>
import functools

import jax
import jax.numpy as jnp
from jax.experimental import pallas as pl
from jax.experimental.pallas import tpu as pltpu


_LANE = 128
_VMEM_LIMIT = 48 * 1024 * 1024        # explicit scoped-VMEM budget (fits v7x's 64 MiB)
_ROW_TILE_BUDGET = 8 * 1024 * 1024    # per-buffer budget used to size the row tile


def _compiler_params(n_axes):
    return pltpu.CompilerParams(
        dimension_semantics=("parallel",) * n_axes,
        vmem_limit_bytes=_VMEM_LIMIT,
    )


# ---------------------------------------------------------------------------
# Pallas kernels
# ---------------------------------------------------------------------------

def _pointwise_kernel(*refs, act, has_exc, has_residual):
    """1x1 conv (channel matmul) + folded BN (+SiLU) (+SE scale) (+residual)."""
    it = iter(refs)
    x_ref = next(it)
    exc_ref = next(it) if has_exc else None
    w_ref = next(it)
    scale_ref = next(it)
    bias_ref = next(it)
    res_ref = next(it) if has_residual else None
    o_ref = next(it)

    x = x_ref[0]                                        # (tile, Cin), native dtype
    if has_exc:
        x = x * exc_ref[0].astype(x.dtype)              # fused SE per-channel scale
    # Feed MXU in native dtype; accumulate in f32.
    y = jnp.dot(x, w_ref[...], preferred_element_type=jnp.float32)
    y = y * scale_ref[...] + bias_ref[...]              # folded BN (f32 epilogue)
    if act:
        y = y * jax.nn.sigmoid(y)                       # SiLU
    if has_residual:
        y = y + res_ref[0].astype(jnp.float32)
    o_ref[0] = y.astype(o_ref.dtype)


def _dw_kernel(x_ref, w_ref, scale_ref, bias_ref, o_ref, sum_ref, xpad_ref, *,
               ksize, stride, pad, hout, wout):
    """Depthwise kxk conv + folded BN + SiLU for one (batch, channel-block).

    Also emits the per-channel spatial sum (fused SE pooling).  "Same" padding
    is constructed in a VMEM scratch, avoiding an HBM pad round-trip.
    """
    H, W, CB = x_ref.shape[1], x_ref.shape[2], x_ref.shape[3]

    xpad_ref[...] = jnp.zeros_like(xpad_ref)
    xpad_ref[pad:pad + H, pad:pad + W, :] = x_ref[0]
    xp = xpad_ref[...]                                  # (Hp, Wp, CB)
    w = w_ref[...]                                      # (k, k, CB)

    acc = jnp.zeros((hout, wout, CB), jnp.float32)
    for kh in range(ksize):
        for kw in range(ksize):
            win = jax.lax.slice(
                xp,
                (kh, kw, 0),
                (kh + (hout - 1) * stride + 1, kw + (wout - 1) * stride + 1, CB),
                (stride, stride, 1))
            acc = acc + win.astype(jnp.float32) * \
                w[kh, kw].astype(jnp.float32)[None, None, :]

    y = acc * scale_ref[...] + bias_ref[...]
    y = y * jax.nn.sigmoid(y)                           # SiLU
    o_ref[0] = y.astype(o_ref.dtype)
    # Fused SE pooling: spatial sum for this (batch, channel-block).
    sum_ref[0] = jnp.sum(y, axis=(0, 1))[None, :]


# ---------------------------------------------------------------------------
# Pallas wrappers
# ---------------------------------------------------------------------------

def _row_tiling(rows, cin, cout, dtype_bytes):
    """Pick a large, VMEM-safe row tile (multiple of 8, or the full row count)."""
    per_row = max((cin + cout) * dtype_bytes * 2, 1)         # in+out, double-buffered
    target = max(8, min(1024, _ROW_TILE_BUDGET // per_row))
    if rows <= target:
        return rows, rows
    t = target - (target % 8)
    while t >= 8:
        if rows % t == 0:
            return t, rows
        t -= 8
    # Rare fallback: pad the row count up to a multiple of the tile.
    tile = max(8, target - (target % 8))
    padded = ((rows + tile - 1) // tile) * tile
    return tile, padded


def pointwise_conv_bn_act(x3, w, scale, bias, *, act, exc=None, residual=None):
    """x3: (B, R, Cin) -> (B, R, Cout).  1x1 conv + folded BN (+SiLU/SE/residual)."""
    B, R, Cin = x3.shape
    Cout = w.shape[1]
    tile, Rp = _row_tiling(R, Cin, Cout, jnp.dtype(x3.dtype).itemsize)
    if Rp != R:
        x3 = jnp.pad(x3, ((0, 0), (0, Rp - R), (0, 0)))
        if residual is not None:
            residual = jnp.pad(residual, ((0, 0), (0, Rp - R), (0, 0)))

    scale2 = scale.reshape(1, Cout).astype(jnp.float32)
    bias2 = bias.reshape(1, Cout).astype(jnp.float32)

    in_specs = [pl.BlockSpec((1, tile, Cin), lambda b, r: (b, r, 0))]
    args = [x3]
    if exc is not None:
        exc3 = exc.reshape(B, 1, Cin).astype(jnp.float32)
        in_specs.append(pl.BlockSpec((1, 1, Cin), lambda b, r: (b, 0, 0)))
        args.append(exc3)
    in_specs += [
        pl.BlockSpec((Cin, Cout), lambda b, r: (0, 0)),
        pl.BlockSpec((1, Cout), lambda b, r: (0, 0)),
        pl.BlockSpec((1, Cout), lambda b, r: (0, 0)),
    ]
    args += [w, scale2, bias2]
    if residual is not None:
        in_specs.append(pl.BlockSpec((1, tile, Cout), lambda b, r: (b, r, 0)))
        args.append(residual)

    kernel = functools.partial(_pointwise_kernel, act=act,
                               has_exc=exc is not None,
                               has_residual=residual is not None)
    out = pl.pallas_call(
        kernel,
        out_shape=jax.ShapeDtypeStruct((B, Rp, Cout), x3.dtype),
        grid=(B, Rp // tile),
        in_specs=in_specs,
        out_specs=pl.BlockSpec((1, tile, Cout), lambda b, r: (b, r, 0)),
        compiler_params=_compiler_params(2),
    )(*args)
    if Rp != R:
        out = out[:, :R, :]
    return out


def depthwise_conv_bn_silu_se_pool(x, w_dw, scale, bias, *, ksize, stride):
    """Depthwise conv + BN + SiLU; also returns per-(N, C) spatial sums (SE pooling)."""
    N, H, W, C = x.shape
    pad = (ksize - 1) // 2
    hout = (H + 2 * pad - ksize) // stride + 1
    wout = (W + 2 * pad - ksize) // stride + 1
    CB = min(C, _LANE)
    n_cb = pl.cdiv(C, CB)
    Hp, Wp = H + 2 * pad, W + 2 * pad

    kernel = functools.partial(_dw_kernel, ksize=ksize, stride=stride,
                               pad=pad, hout=hout, wout=wout)
    out, sums = pl.pallas_call(
        kernel,
        out_shape=(jax.ShapeDtypeStruct((N, hout, wout, C), x.dtype),
                   jax.ShapeDtypeStruct((N, 1, C), jnp.float32)),
        grid=(N, n_cb),
        in_specs=[
            pl.BlockSpec((1, H, W, CB), lambda n, c: (n, 0, 0, c)),
            pl.BlockSpec((ksize, ksize, CB), lambda n, c: (0, 0, c)),
            pl.BlockSpec((1, 1, CB), lambda n, c: (0, 0, c)),
            pl.BlockSpec((1, 1, CB), lambda n, c: (0, 0, c)),
        ],
        out_specs=(
            pl.BlockSpec((1, hout, wout, CB), lambda n, c: (n, 0, 0, c)),
            pl.BlockSpec((1, 1, CB), lambda n, c: (n, 0, c)),
        ),
        scratch_shapes=[pltpu.VMEM((Hp, Wp, CB), x.dtype)],
        compiler_params=_compiler_params(2),
    )(x, w_dw,
      scale.reshape(1, 1, C).astype(jnp.float32),
      bias.reshape(1, 1, C).astype(jnp.float32))
    return out, sums


# ---------------------------------------------------------------------------
# Parameter setup / glue (plain JAX)
# ---------------------------------------------------------------------------

def _fold_bn(bn, eps=1e-5):
    scale = bn["gamma"] / jnp.sqrt(bn["var"] + eps)
    bias = bn["beta"] - bn["mean"] * scale
    return scale.astype(jnp.float32), bias.astype(jnp.float32)


def init_params(key, cfg):
    Cin = cfg["input_c"]
    Cout = cfg["out_c"]
    exp_c = Cin * cfg["expand_ratio"]
    k = cfg["kernel_size"]
    Csq = int(Cin * cfg["se_ratio"])
    ks = jax.random.split(key, 16)

    def bn(kk, c):
        a, b, m, v = jax.random.split(kk, 4)
        return dict(gamma=jax.random.uniform(a, (c,), jnp.float32, 0.5, 1.5),
                    beta=0.1 * jax.random.normal(b, (c,), jnp.float32),
                    mean=0.1 * jax.random.normal(m, (c,), jnp.float32),
                    var=jax.random.uniform(v, (c,), jnp.float32, 0.5, 1.5))

    return dict(
        w_expand=0.1 * jax.random.normal(ks[0], (Cin, exp_c), jnp.float32),
        bn1=bn(ks[1], exp_c),
        w_dw=0.1 * jax.random.normal(ks[2], (k, k, exp_c), jnp.float32),
        bn2=bn(ks[3], exp_c),
        w_se_reduce=0.1 * jax.random.normal(ks[4], (exp_c, Csq), jnp.float32),
        b_se_reduce=0.1 * jax.random.normal(ks[5], (Csq,), jnp.float32),
        w_se_expand=0.1 * jax.random.normal(ks[6], (Csq, exp_c), jnp.float32),
        b_se_expand=0.1 * jax.random.normal(ks[7], (exp_c,), jnp.float32),
        w_project=0.1 * jax.random.normal(ks[8], (exp_c, Cout), jnp.float32),
        bn3=bn(ks[9], Cout),
    )


def mbconv_forward(x_nchw, params, cfg):
    """MBConv forward.  Input/output are NCHW (PyTorch convention)."""
    N, Cin, H, W = x_nchw.shape
    k, s = cfg["kernel_size"], cfg["stride"]
    exp_c = Cin * cfg["expand_ratio"]
    Cout = cfg["out_c"]
    has_shortcut = (s == 1) and (Cin == Cout)

    x = jnp.transpose(x_nchw, (0, 2, 3, 1))                  # -> NHWC

    # 1) expand 1x1 conv + BN + SiLU (all spatial rows flattened, big row tiles)
    scale_e, bias_e = _fold_bn(params["bn1"])
    y = pointwise_conv_bn_act(x.reshape(1, N * H * W, Cin), params["w_expand"],
                              scale_e, bias_e, act=True)
    y = y.reshape(N, H, W, exp_c)

    # 2) depthwise kxk conv + BN + SiLU, SE spatial pooling fused (no jnp.pad pass)
    scale_d, bias_d = _fold_bn(params["bn2"])
    y, se_sums = depthwise_conv_bn_silu_se_pool(y, params["w_dw"], scale_d, bias_d,
                                                ksize=k, stride=s)
    _, hout, wout, _ = y.shape

    # 3) SE excitation: two tiny FCs batched over N in plain JAX (negligible work);
    #    the per-channel scaling itself is fused into the project kernel below,
    #    so the expanded activation is never re-read/re-written for SE.
    if cfg["se_ratio"] > 0:
        pooled = se_sums[:, 0, :] / float(hout * wout)       # (N, exp_c)
        r = pooled @ params["w_se_reduce"] + params["b_se_reduce"]
        r = r * jax.nn.sigmoid(r)                            # SiLU
        exc = jax.nn.sigmoid(r @ params["w_se_expand"] + params["b_se_expand"])
    else:
        exc = None

    # 4) project 1x1 conv + BN (no act), SE scale and shortcut fused into the kernel
    scale_p, bias_p = _fold_bn(params["bn3"])
    residual = x.reshape(N, H * W, Cin) if has_shortcut else None
    out = pointwise_conv_bn_act(y.reshape(N, hout * wout, exp_c), params["w_project"],
                                scale_p, bias_p, act=False, exc=exc, residual=residual)
    out = out.reshape(N, hout, wout, Cout)
    # DropPath: identity at inference (training=False).
    return jnp.transpose(out, (0, 3, 1, 2))                  # -> NCHW


# ---------------------------------------------------------------------------
# Pure-JAX reference (no Pallas) for correctness check
# ---------------------------------------------------------------------------

def reference_forward(x_nchw, params, cfg):
    N, Cin, H, W = x_nchw.shape
    k, s = cfg["kernel_size"], cfg["stride"]
    exp_c = Cin * cfg["expand_ratio"]
    Cout = cfg["out_c"]
    has_shortcut = (s == 1) and (Cin == Cout)
    silu = lambda t: t * jax.nn.sigmoid(t)

    x = jnp.transpose(x_nchw, (0, 2, 3, 1)).astype(jnp.float32)

    sc, bi = _fold_bn(params["bn1"])
    y = silu(jnp.einsum("nhwc,co->nhwo", x, params["w_expand"]) * sc + bi)

    p = (k - 1) // 2
    hout = (H + 2 * p - k) // s + 1
    wout = (W + 2 * p - k) // s + 1
    yp = jnp.pad(y, ((0, 0), (p, p), (p, p), (0, 0)))
    acc = jnp.zeros((N, hout, wout, exp_c), jnp.float32)
    for kh in range(k):
        for kw in range(k):
            win = yp[:, kh:kh + (hout - 1) * s + 1:s, kw:kw + (wout - 1) * s + 1:s, :]
            acc = acc + win * params["w_dw"][kh, kw][None, None, None, :]
    sc, bi = _fold_bn(params["bn2"])
    y = silu(acc * sc + bi)

    if cfg["se_ratio"] > 0:
        pooled = y.mean(axis=(1, 2))                                  # (N, exp_c)
        r = silu(pooled @ params["w_se_reduce"] + params["b_se_reduce"])
        e = jax.nn.sigmoid(r @ params["w_se_expand"] + params["b_se_expand"])
        y = y * e[:, None, None, :]

    sc, bi = _fold_bn(params["bn3"])
    out = jnp.einsum("nhwc,co->nhwo", y, params["w_project"]) * sc + bi
    if has_shortcut:
        out = out + x
    return jnp.transpose(out, (0, 3, 1, 2))


# ---------------------------------------------------------------------------
# Demo
# ---------------------------------------------------------------------------

if __name__ == "__main__":
    cfg = dict(kernel_size=3, input_c=8, out_c=8, expand_ratio=4,
               stride=1, se_ratio=0.25, drop_rate=0.0)

    key = jax.random.PRNGKey(0)
    k_params, k_x = jax.random.split(key)
    params = init_params(k_params, cfg)
    x = jax.random.normal(k_x, (2, cfg["input_c"], 16, 16), jnp.float32)  # NCHW

    out = mbconv_forward(x, params, cfg)
    out = jax.block_until_ready(out)
    assert out.shape == (2, cfg["out_c"], 16, 16), out.shape

    ref = jax.block_until_ready(reference_forward(x, params, cfg))
    err = float(jnp.max(jnp.abs(out - ref)))
    assert err < 1e-3, f"max abs diff vs reference: {err}"

    print("KERNEL_OK")
</pallas_src>

<mosaic_0001>
module attributes {stable_mosaic.version = 11 : i64} {
  func.func @_pointwise_kernel(%arg0: i32, %arg1: i32, %arg2: memref<1x512x8xf32, #tpu.memory_space<vmem>>, %arg3: memref<8x32xf32, #tpu.memory_space<vmem>>, %arg4: memref<1x32xf32, #tpu.memory_space<vmem>>, %arg5: memref<1x32xf32, #tpu.memory_space<vmem>>, %arg6: memref<1x512x32xf32, #tpu.memory_space<vmem>>) attributes {dimension_semantics = [#tpu.dimension_semantics<parallel>, #tpu.dimension_semantics<parallel>], iteration_bounds = array<i64: 1, 1>, scalar_prefetch = 0 : i64, scratch_operands = 0 : i64, tpu.core_type = #tpu.core_type<tc>, window_params = [{transform_indices = @transform_0, window_bounds = array<i64: 1, 512, 8>}, {pipeline_mode = #tpu.pipeline_mode<synchronous>, transform_indices = @transform_1, window_bounds = array<i64: 8, 32>}, {pipeline_mode = #tpu.pipeline_mode<synchronous>, transform_indices = @transform_2, window_bounds = array<i64: 1, 32>}, {pipeline_mode = #tpu.pipeline_mode<synchronous>, transform_indices = @transform_3, window_bounds = array<i64: 1, 32>}, {transform_indices = @transform_4, window_bounds = array<i64: 1, 512, 32>}]} {
    %c0 = arith.constant 0 : index
    %c0_0 = arith.constant 0 : index
    %c0_1 = arith.constant 0 : index
    %0 = vector.load %arg2[%c0, %c0_0, %c0_1] : memref<1x512x8xf32, #tpu.memory_space<vmem>>, vector<1x512x8xf32>
    %1 = vector.shape_cast %0 : vector<1x512x8xf32> to vector<512x8xf32>
    %c0_2 = arith.constant 0 : index
    %c0_3 = arith.constant 0 : index
    %2 = vector.load %arg3[%c0_2, %c0_3] : memref<8x32xf32, #tpu.memory_space<vmem>>, vector<8x32xf32>
    %cst = arith.constant dense<0.000000e+00> : vector<512x32xf32>
    %3 = tpu.matmul %1, %2, %cst {dimension_numbers = #tpu.dot_dimension_numbers<[1], [0], [0], [1], [0, 0, 1, 1], [], []>} : vector<512x8xf32>, vector<8x32xf32>, vector<512x32xf32> -> vector<512x32xf32>
    %c0_4 = arith.constant 0 : index
    %c0_5 = arith.constant 0 : index
    %4 = vector.load %arg4[%c0_4, %c0_5] : memref<1x32xf32, #tpu.memory_space<vmem>>, vector<1x32xf32>
    %5 = vector.broadcast %4 : vector<1x32xf32> to vector<512x32xf32>
    %6 = arith.mulf %3, %5 : vector<512x32xf32>
    %c0_6 = arith.constant 0 : index
    %c0_7 = arith.constant 0 : index
    %7 = vector.load %arg5[%c0_6, %c0_7] : memref<1x32xf32, #tpu.memory_space<vmem>>, vector<1x32xf32>
    %8 = vector.broadcast %7 : vector<1x32xf32> to vector<512x32xf32>
    %9 = arith.addf %6, %8 : vector<512x32xf32>
    %10 = arith.negf %9 : vector<512x32xf32>
    %11 = math.exp %10 : vector<512x32xf32>
    %cst_8 = arith.constant 1.000000e+00 : f32
    %12 = vector.broadcast %cst_8 : f32 to vector<512x32xf32>
    %13 = arith.addf %12, %11 : vector<512x32xf32>
    %14 = arith.divf %12, %13 : vector<512x32xf32>
    %15 = arith.mulf %9, %14 : vector<512x32xf32>
    %c0_9 = arith.constant 0 : index
    %c0_10 = arith.constant 0 : index
    %c0_11 = arith.constant 0 : index
    %16 = vector.load %arg6[%c0_9, %c0_10, %c0_11] : memref<1x512x32xf32, #tpu.memory_space<vmem>>, vector<1x512x32xf32>
    %17 = vector.shape_cast %16 : vector<1x512x32xf32> to vector<512x32xf32>
    %18 = vector.shape_cast %15 : vector<512x32xf32> to vector<1x512x32xf32>
    tpu.vector_store %arg6[%c0_9, %c0_10, %c0_11], %18 {strides = array<i32>} : memref<1x512x32xf32, #tpu.memory_space<vmem>>, vector<1x512x32xf32>,
    return
  }
  func.func @transform_0(%arg0: i32, %arg1: i32) -> (i32, i32, i32) {
    %c0_i32 = arith.constant 0 : i32
    %c0_i32_0 = arith.constant 0 : i32
    return %arg0, %arg1, %c0_i32 : i32, i32, i32
  }
  func.func @transform_1(%arg0: i32, %arg1: i32) -> (i32, i32) {
    %c0_i32 = arith.constant 0 : i32
    %c0_i32_0 = arith.constant 0 : i32
    %c0_i32_1 = arith.constant 0 : i32
    return %c0_i32, %c0_i32_0 : i32, i32
  }
  func.func @transform_2(%arg0: i32, %arg1: i32) -> (i32, i32) {
    %c0_i32 = arith.constant 0 : i32
    %c0_i32_0 = arith.constant 0 : i32
    %c0_i32_1 = arith.constant 0 : i32
    return %c0_i32, %c0_i32_0 : i32, i32
  }
  func.func @transform_3(%arg0: i32, %arg1: i32) -> (i32, i32) {
    %c0_i32 = arith.constant 0 : i32
    %c0_i32_0 = arith.constant 0 : i32
    %c0_i32_1 = arith.constant 0 : i32
    return %c0_i32, %c0_i32_0 : i32, i32
  }
  func.func @transform_4(%arg0: i32, %arg1: i32) -> (i32, i32, i32) {
    %c0_i32 = arith.constant 0 : i32
    %c0_i32_0 = arith.constant 0 : i32
    return %arg0, %arg1, %c0_i32 : i32, i32, i32
  }
}

</mosaic_0001>

<llo_original>
// kernel: tpu_custom_call.1
$region0: #{tpu_custom_call.1}
  #allocation0 [shape = 'u32[]', space=smem, size = 0x4, offset = 0x4, fixed_abs, tag = 'smem constant byte address 0x4 - core index']
  #allocation1 [shape = 'u32[144,128]{1,0:T(1,128)}', space=vmem, size = 0x12000, scoped, tag = 'internal scratch']
  %s0 = inlined_call_operand.vmem [shape: f32[1,512,8], index: 0, kind: input, shape index: {}]
  %s1 = inlined_call_operand.vmem [shape: f32[8,32], index: 1, kind: input, shape index: {}]
  %s2 = inlined_call_operand.vmem [shape: f32[1,32], index: 2, kind: input, shape index: {}]
  %s3 = inlined_call_operand.vmem [shape: f32[1,32], index: 3, kind: input, shape index: {}]
  %s4 = inlined_call_operand.vmem [shape: f32[1,512,32], index: 4, kind: output, shape index: {}]
  %s5 = sld [smem:[#allocation0]]
  $region26: #{tpu_custom_call.1} parent=0
    _
  %s7 = ssub.s32 1, %s5
  %s8 = scalar_select 0, %s7, %s5
  // Predicated region
  $region2: #{tpu_custom_call.1} parent=0 // pred_check
    _
  $region3: #{tpu_custom_call.1} parent=0 // pred_check_branch
    %10 = sbr.rel (0) target = $region5
  $region4: #{tpu_custom_call.1} parent=0 // pred_region
    _
  $region5: #{tpu_custom_call.1} parent=0 // pred_fallthru
    _
  // Predicated region
  $region6: #{tpu_custom_call.1} parent=0 // pred_check
    _
  $region7: #{tpu_custom_call.1} parent=0 // pred_check_branch
    %12 = sbr.rel (0) target = $region9
  $region8: #{tpu_custom_call.1} parent=0 // pred_region
    _
  $region9: #{tpu_custom_call.1} parent=0 // pred_fallthru
    _
  // Predicated region
  $region10: #{tpu_custom_call.1} parent=0 // pred_check
    _
  $region11: #{tpu_custom_call.1} parent=0 // pred_check_branch
    %14 = sbr.rel (0) target = $region13
  $region12: #{tpu_custom_call.1} parent=0 // pred_region
    _
  $region13: #{tpu_custom_call.1} parent=0 // pred_fallthru
    _
  // Predicated region
  $region14: #{tpu_custom_call.1} parent=0 // pred_check
    _
  $region15: #{tpu_custom_call.1} parent=0 // pred_check_branch
    %16 = sbr.rel (0) target = $region17
  $region16: #{tpu_custom_call.1} parent=0 // pred_region
    _
  $region17: #{tpu_custom_call.1} parent=0 // pred_fallthru
    _
  %v17 = vld [vmem:[%s0] sm:$0xff]
  %v18 = vld [vmem:[%s0 + $0x8] sm:$0xff]
  %v19 = vld [vmem:[%s0 + $0x10] sm:$0xff]
  %v20 = vld [vmem:[%s0 + $0x18] sm:$0xff]
  %v21 = vld [vmem:[%s0 + $0x20] sm:$0xff]
  %v22 = vld [vmem:[%s0 + $0x28] sm:$0xff]
  %v23 = vld [vmem:[%s0 + $0x30] sm:$0xff]
  %v24 = vld [vmem:[%s0 + $0x38] sm:$0xff]
  %v25 = vld [vmem:[%s0 + $0x40] sm:$0xff]
  %v26 = vld [vmem:[%s0 + $0x48] sm:$0xff]
  %v27 = vld [vmem:[%s0 + $0x50] sm:$0xff]
  %v28 = vld [vmem:[%s0 + $0x58] sm:$0xff]
  %v29 = vld [vmem:[%s0 + $0x60] sm:$0xff]
  %v30 = vld [vmem:[%s0 + $0x68] sm:$0xff]
  %v31 = vld [vmem:[%s0 + $0x70] sm:$0xff]
  %v32 = vld [vmem:[%s0 + $0x78] sm:$0xff]
  %v33 = vld [vmem:[%s0 + $0x80] sm:$0xff]
  %v34 = vld [vmem:[%s0 + $0x88] sm:$0xff]
  %v35 = vld [vmem:[%s0 + $0x90] sm:$0xff]
  %v36 = vld [vmem:[%s0 + $0x98] sm:$0xff]
  %v37 = vld [vmem:[%s0 + $0xa0] sm:$0xff]
  %v38 = vld [vmem:[%s0 + $0xa8] sm:$0xff]
  %v39 = vld [vmem:[%s0 + $0xb0] sm:$0xff]
  %v40 = vld [vmem:[%s0 + $0xb8] sm:$0xff]
  %v41 = vld [vmem:[%s0 + $0xc0] sm:$0xff]
  %v42 = vld [vmem:[%s0 + $0xc8] sm:$0xff]
  %v43 = vld [vmem:[%s0 + $0xd0] sm:$0xff]
  %v44 = vld [vmem:[%s0 + $0xd8] sm:$0xff]
  %v45 = vld [vmem:[%s0 + $0xe0] sm:$0xff]
  %v46 = vld [vmem:[%s0 + $0xe8] sm:$0xff]
  %v47 = vld [vmem:[%s0 + $0xf0] sm:$0xff]
  %v48 = vld [vmem:[%s0 + $0xf8] sm:$0xff]
  %v49 = vld [vmem:[%s0 + $0x100] sm:$0xff]
  %v50 = vld [vmem:[%s0 + $0x108] sm:$0xff]
  %v51 = vld [vmem:[%s0 + $0x110] sm:$0xff]
  %v52 = vld [vmem:[%s0 + $0x118] sm:$0xff]
  %v53 = vld [vmem:[%s0 + $0x120] sm:$0xff]
  %v54 = vld [vmem:[%s0 + $0x128] sm:$0xff]
  %v55 = vld [vmem:[%s0 + $0x130] sm:$0xff]
  %v56 = vld [vmem:[%s0 + $0x138] sm:$0xff]
  %v57 = vld [vmem:[%s0 + $0x140] sm:$0xff]
  %v58 = vld [vmem:[%s0 + $0x148] sm:$0xff]
  %v59 = vld [vmem:[%s0 + $0x150] sm:$0xff]
  %v60 = vld [vmem:[%s0 + $0x158] sm:$0xff]
  %v61 = vld [vmem:[%s0 + $0x160] sm:$0xff]
  %v62 = vld [vmem:[%s0 + $0x168] sm:$0xff]
  %v63 = vld [vmem:[%s0 + $0x170] sm:$0xff]
  %v64 = vld [vmem:[%s0 + $0x178] sm:$0xff]
  %v65 = vld [vmem:[%s0 + $0x180] sm:$0xff]
  %v66 = vld [vmem:[%s0 + $0x188] sm:$0xff]
  %v67 = vld [vmem:[%s0 + $0x190] sm:$0xff]
  %v68 = vld [vmem:[%s0 + $0x198] sm:$0xff]
  %v69 = vld [vmem:[%s0 + $0x1a0] sm:$0xff]
  %v70 = vld [vmem:[%s0 + $0x1a8] sm:$0xff]
  %v71 = vld [vmem:[%s0 + $0x1b0] sm:$0xff]
  %v72 = vld [vmem:[%s0 + $0x1b8] sm:$0xff]
  %v73 = vld [vmem:[%s0 + $0x1c0] sm:$0xff]
  %v74 = vld [vmem:[%s0 + $0x1c8] sm:$0xff]
  %v75 = vld [vmem:[%s0 + $0x1d0] sm:$0xff]
  %v76 = vld [vmem:[%s0 + $0x1d8] sm:$0xff]
  %v77 = vld [vmem:[%s0 + $0x1e0] sm:$0xff]
  %v78 = vld [vmem:[%s0 + $0x1e8] sm:$0xff]
  %v79 = vld [vmem:[%s0 + $0x1f0] sm:$0xff]
  %v80 = vld [vmem:[%s0 + $0x1f8] sm:$0xff]
  %v81 = vld [vmem:[%s1] sm:$0xff]
  %vm82 = vcmask 64512
  %v84 = vsel %vm82, %v17, 0
  %v87 = vsel %vm82, %v18, 0
  %v90 = vsel %vm82, %v19, 0
  %v93 = vsel %vm82, %v20, 0
  %v96 = vsel %vm82, %v21, 0
  %v99 = vsel %vm82, %v22, 0
  %v102 = vsel %vm82, %v23, 0
  %v105 = vsel %vm82, %v24, 0
  %v108 = vsel %vm82, %v25, 0
  %v111 = vsel %vm82, %v26, 0
  %v114 = vsel %vm82, %v27, 0
  %v117 = vsel %vm82, %v28, 0
  %v120 = vsel %vm82, %v29, 0
  %v123 = vsel %vm82, %v30, 0
  %v126 = vsel %vm82, %v31, 0
  %v129 = vsel %vm82, %v32, 0
  %v132 = vsel %vm82, %v33, 0
  %v135 = vsel %vm82, %v34, 0
  %v138 = vsel %vm82, %v35, 0
  %v141 = vsel %vm82, %v36, 0
  %v144 = vsel %vm82, %v37, 0
  %v147 = vsel %vm82, %v38, 0
  %v150 = vsel %vm82, %v39, 0
  %v153 = vsel %vm82, %v40, 0
  %v156 = vsel %vm82, %v41, 0
  %v159 = vsel %vm82, %v42, 0
  %v162 = vsel %vm82, %v43, 0
  %v165 = vsel %vm82, %v44, 0
  %v168 = vsel %vm82, %v45, 0
  %v171 = vsel %vm82, %v46, 0
  %v174 = vsel %vm82, %v47, 0
  %v177 = vsel %vm82, %v48, 0
  %v180 = vsel %vm82, %v49, 0
  %v183 = vsel %vm82, %v50, 0
  %v186 = vsel %vm82, %v51, 0
  %v189 = vsel %vm82, %v52, 0
  %v192 = vsel %vm82, %v53, 0
  %v195 = vsel %vm82, %v54, 0
  %v198 = vsel %vm82, %v55, 0
  %v201 = vsel %vm82, %v56, 0
  %v204 = vsel %vm82, %v57, 0
  %v207 = vsel %vm82, %v58, 0
  %v210 = vsel %vm82, %v59, 0
  %v213 = vsel %vm82, %v60, 0
  %v216 = vsel %vm82, %v61, 0
  %v219 = vsel %vm82, %v62, 0
  %v222 = vsel %vm82, %v63, 0
  %v225 = vsel %vm82, %v64, 0
  %v228 = vsel %vm82, %v65, 0
  %v231 = vsel %vm82, %v66, 0
  %v234 = vsel %vm82, %v67, 0
  %v237 = vsel %vm82, %v68, 0
  %v240 = vsel %vm82, %v69, 0
  %v243 = vsel %vm82, %v70, 0
  %v246 = vsel %vm82, %v71, 0
  %v249 = vsel %vm82, %v72, 0
  %v252 = vsel %vm82, %v73, 0
  %v255 = vsel %vm82, %v74, 0
  %v258 = vsel %vm82, %v75, 0
  %v261 = vsel %vm82, %v76, 0
  %v264 = vsel %vm82, %v77, 0
  %v267 = vsel %vm82, %v78, 0
  %v270 = vsel %vm82, %v79, 0
  %v273 = vsel %vm82, %v80, 0
  %275 = vmatprep.subr.mxu0 0.0
  %276 = vmatpush1.msra.mxu0 %v81
  %277 = vmatprep.subr.mxu0 0.0
  %278 = vmatpush1.msra.mxu0 0.0
  %279 = vmatprep.subr.mxu0 0.0
  %280 = vmatpush1.msra.mxu0 0.0
  %281 = vmatprep.subr.mxu0 0.0
  %282 = vmatpush1.msra.mxu0 0.0
  %283 = vmatprep.subr.mxu0 0.0
  %284 = vmatpush1.msra.mxu0 0.0
  %285 = vmatprep.subr.mxu0 0.0
  %286 = vmatpush1.msra.mxu0 0.0
  %287 = vmatprep.subr.mxu0 0.0
  %288 = vmatpush1.msra.mxu0 0.0
  %289 = vmatprep.subr.mxu0 0.0
  %290 = vmatpush1.msra.mxu0 0.0
  %291 = vmatprep.subr.mxu0 0.0
  %292 = vmatpush1.msra.mxu0 0.0
  %293 = vmatprep.subr.mxu0 0.0
  %294 = vmatpush1.msra.mxu0 0.0
  %295 = vmatprep.subr.mxu0 0.0
  %296 = vmatpush1.msra.mxu0 0.0
  %297 = vmatprep.subr.mxu0 0.0
  %298 = vmatpush1.msra.mxu0 0.0
  %299 = vmatprep.subr.mxu0 0.0
  %300 = vmatpush1.msra.mxu0 0.0
  %301 = vmatprep.subr.mxu0 0.0
  %302 = vmatpush1.msra.mxu0 0.0
  %303 = vmatprep.subr.mxu0 0.0
  %304 = vmatpush1.msra.mxu0 0.0
  %305 = vmatprep.subr.mxu0 0.0
  %306 = vmatpush1.msra.mxu0 0.0
  %307 = vmatprep.subr.mxu0 0.0
  %308 = vmatpush1.msra.mxu0 0.0
  %309 = vmatprep.subr.mxu0 0.0
  %310 = vmatpush1.msra.mxu0 0.0
  %311 = vmatprep.subr.mxu0 0.0
  %312 = vmatpush1.msra.mxu0 0.0
  %313 = vmatprep.subr.mxu0 0.0
  %314 = vmatpush1.msra.mxu0 0.0
  %315 = vmatprep.subr.mxu0 0.0
  %316 = vmatpush1.msra.mxu0 0.0
  %317 = vmatprep.subr.mxu0 0.0
  %318 = vmatpush1.msra.mxu0 0.0
  %319 = vmatprep.subr.mxu0 0.0
  %320 = vmatpush1.msra.mxu0 0.0
  %321 = vmatprep.subr.mxu0 0.0
  %322 = vmatpush1.msra.mxu0 0.0
  %323 = vmatprep.subr.mxu0 0.0
  %324 = vmatpush1.msra.mxu0 0.0
  %325 = vmatprep.subr.mxu0 0.0
  %326 = vmatpush1.msra.mxu0 0.0
  %327 = vmatprep.subr.mxu0 0.0
  %328 = vmatpush1.msra.mxu0 0.0
  %329 = vmatprep.subr.mxu0 0.0
  %330 = vmatpush1.msra.mxu0 0.0
  %331 = vmatprep.subr.mxu0 0.0
  %332 = vmatpush1.msra.mxu0 0.0
  %333 = vmatprep.subr.mxu0 0.0
  %334 = vmatpush1.msra.mxu0 0.0
  %335 = vmatprep.subr.mxu0 0.0
  %336 = vmatpush1.msra.mxu0 0.0
  %337 = vmatprep.subr.mxu0 0.0
  %338 = vmatpush1.msra.mxu0 0.0
  %339 = vmatprep.mubr.f32.mxu0 0.0
  %340 = vmatmul.mubr.f32.gmra.mrb[0].mxu0 %v84
  %v341 = vpop.f32.mrb[0].mxu0
  %v342 = vadd.f32 0.0, %v341
  %v343 = vpop.f32.mrb[0].mxu0
  %344 = vmatprep.mubr.f32.mxu0 0.0
  %345 = vmatmul.mubr.f32.gmra.mrb[0].mxu0 %v87
  %v346 = vpop.f32.mrb[0].mxu0
  %v347 = vadd.f32 0.0, %v346
  %v348 = vpop.f32.mrb[0].mxu0
  %349 = vmatprep.mubr.f32.mxu0 0.0
  %350 = vmatmul.mubr.f32.gmra.mrb[0].mxu0 %v90
  %v351 = vpop.f32.mrb[0].mxu0
  %v352 = vadd.f32 0.0, %v351
  %v353 = vpop.f32.mrb[0].mxu0
  %354 = vmatprep.mubr.f32.mxu0 0.0
  %355 = vmatmul.mubr.f32.gmra.mrb[0].mxu0 %v93
  %v356 = vpop.f32.mrb[0].mxu0
  %v357 = vadd.f32 0.0, %v356
  %v358 = vpop.f32.mrb[0].mxu0
  %359 = vmatprep.mubr.f32.mxu0 0.0
  %360 = vmatmul.mubr.f32.gmra.mrb[0].mxu0 %v96
  %v361 = vpop.f32.mrb[0].mxu0
  %v362 = vadd.f32 0.0, %v361
  %v363 = vpop.f32.mrb[0].mxu0
  %364 = vmatprep.mubr.f32.mxu0 0.0
  %365 = vmatmul.mubr.f32.gmra.mrb[0].mxu0 %v99
  %v366 = vpop.f32.mrb[0].mxu0
  %v367 = vadd.f32 0.0, %v366
  %v368 = vpop.f32.mrb[0].mxu0
  %369 = vmatprep.mubr.f32.mxu0 0.0
  %370 = vmatmul.mubr.f32.gmra.mrb[0].mxu0 %v102
  %v371 = vpop.f32.mrb[0].mxu0
  %v372 = vadd.f32 0.0, %v371
  %v373 = vpop.f32.mrb[0].mxu0
  %374 = vmatprep.mubr.f32.mxu0 0.0
  %375 = vmatmul.mubr.f32.gmra.mrb[0].mxu0 %v105
  %v376 = vpop.f32.mrb[0].mxu0
  %v377 = vadd.f32 0.0, %v376
  %v378 = vpop.f32.mrb[0].mxu0
  %379 = vmatprep.mubr.f32.mxu0 0.0
  %380 = vmatmul.mubr.f32.gmra.mrb[0].mxu0 %v108
  %v381 = vpop.f32.mrb[0].mxu0
  %v382 = vadd.f32 0.0, %v381
  %v383 = vpop.f32.mrb[0].mxu0
  %384 = vmatprep.mubr.f32.mxu0 0.0
  %385 = vmatmul.mubr.f32.gmra.mrb[0].mxu0 %v111
  %v386 = vpop.f32.mrb[0].mxu0
  %v387 = vadd.f32 0.0, %v386
  %v388 = vpop.f32.mrb[0].mxu0
  %389 = vmatprep.mubr.f32.mxu0 0.0
  %390 = vmatmul.mubr.f32.gmra.mrb[0].mxu0 %v114
  %v391 = vpop.f32.mrb[0].mxu0
  %v392 = vadd.f32 0.0, %v391
  %v393 = vpop.f32.mrb[0].mxu0
  %394 = vmatprep.mubr.f32.mxu0 0.0
  %395 = vmatmul.mubr.f32.gmra.mrb[0].mxu0 %v117
  %v396 = vpop.f32.mrb[0].mxu0
  %v397 = vadd.f32 0.0, %v396
  %v398 = vpop.f32.mrb[0].mxu0
  %399 = vmatprep.mubr.f32.mxu0 0.0
  %400 = vmatmul.mubr.f32.gmra.mrb[0].mxu0 %v120
  %v401 = vpop.f32.mrb[0].mxu0
  %v402 = vadd.f32 0.0, %v401
  %v403 = vpop.f32.mrb[0].mxu0
  %404 = vmatprep.mubr.f32.mxu0 0.0
  %405 = vmatmul.mubr.f32.gmra.mrb[0].mxu0 %v123
  %v406 = vpop.f32.mrb[0].mxu0
  %v407 = vadd.f32 0.0, %v406
  %v408 = vpop.f32.mrb[0].mxu0
  %409 = vmatprep.mubr.f32.mxu0 0.0
  %410 = vmatmul.mubr.f32.gmra.mrb[0].mxu0 %v126
  %v411 = vpop.f32.mrb[0].mxu0
  %v412 = vadd.f32 0.0, %v411
  %v413 = vpop.f32.mrb[0].mxu0
  %414 = vmatprep.mubr.f32.mxu0 0.0
  %415 = vmatmul.mubr.f32.gmra.mrb[0].mxu0 %v129
  %v416 = vpop.f32.mrb[0].mxu0
  %v417 = vadd.f32 0.0, %v416
  %v418 = vpop.f32.mrb[0].mxu0
  %419 = vmatprep.mubr.f32.mxu0 0.0
  %420 = vmatmul.mubr.f32.gmra.mrb[0].mxu0 %v132
  %v421 = vpop.f32.mrb[0].mxu0
  %v422 = vadd.f32 0.0, %v421
  %v423 = vpop.f32.mrb[0].mxu0
  %424 = vmatprep.mubr.f32.mxu0 0.0
  %425 = vmatmul.mubr.f32.gmra.mrb[0].mxu0 %v135
  %v426 = vpop.f32.mrb[0].mxu0
  %v427 = vadd.f32 0.0, %v426
  %v428 = vpop.f32.mrb[0].mxu0
  %429 = vmatprep.mubr.f32.mxu0 0.0
  %430 = vmatmul.mubr.f32.gmra.mrb[0].mxu0 %v138
  %v431 = vpop.f32.mrb[0].mxu0
  %v432 = vadd.f32 0.0, %v431
  %v433 = vpop.f32.mrb[0].mxu0
  %434 = vmatprep.mubr.f32.mxu0 0.0
  %435 = vmatmul.mubr.f32.gmra.mrb[0].mxu0 %v141
  %v436 = vpop.f32.mrb[0].mxu0
  %v437 = vadd.f32 0.0, %v436
  %v438 = vpop.f32.mrb[0].mxu0
  %439 = vmatprep.mubr.f32.mxu0 0.0
  %440 = vmatmul.mubr.f32.gmra.mrb[0].mxu0 %v144
  %v441 = vpop.f32.mrb[0].mxu0
  %v442 = vadd.f32 0.0, %v441
  %v443 = vpop.f32.mrb[0].mxu0
  %444 = vmatprep.mubr.f32.mxu0 0.0
  %445 = vmatmul.mubr.f32.gmra.mrb[0].mxu0 %v147
  %v446 = vpop.f32.mrb[0].mxu0
  %v447 = vadd.f32 0.0, %v446
  %v448 = vpop.f32.mrb[0].mxu0
  %449 = vmatprep.mubr.f32.mxu0 0.0
  %450 = vmatmul.mubr.f32.gmra.mrb[0].mxu0 %v150
  %v451 = vpop.f32.mrb[0].mxu0
  %v452 = vadd.f32 0.0, %v451
  %v453 = vpop.f32.mrb[0].mxu0
  %454 = vmatprep.mubr.f32.mxu0 0.0
  %455 = vmatmul.mubr.f32.gmra.mrb[0].mxu0 %v153
  %v456 = vpop.f32.mrb[0].mxu0
  %v457 = vadd.f32 0.0, %v456
  %v458 = vpop.f32.mrb[0].mxu0
  %459 = vmatprep.mubr.f32.mxu0 0.0
  %460 = vmatmul.mubr.f32.gmra.mrb[0].mxu0 %v156
  %v461 = vpop.f32.mrb[0].mxu0
  %v462 = vadd.f32 0.0, %v461
  %v463 = vpop.f32.mrb[0].mxu0
  %464 = vmatprep.mubr.f32.mxu0 0.0
  %465 = vmatmul.mubr.f32.gmra.mrb[0].mxu0 %v159
  %v466 = vpop.f32.mrb[0].mxu0
  %v467 = vadd.f32 0.0, %v466
  %v468 = vpop.f32.mrb[0].mxu0
  %469 = vmatprep.mubr.f32.mxu0 0.0
  %470 = vmatmul.mubr.f32.gmra.mrb[0].mxu0 %v162
  %v471 = vpop.f32.mrb[0].mxu0
  %v472 = vadd.f32 0.0, %v471
  %v473 = vpop.f32.mrb[0].mxu0
  %474 = vmatprep.mubr.f32.mxu0 0.0
  %475 = vmatmul.mubr.f32.gmra.mrb[0].mxu0 %v165
  %v476 = vpop.f32.mrb[0].mxu0
  %v477 = vadd.f32 0.0, %v476
  %v478 = vpop.f32.mrb[0].mxu0
  %479 = vmatprep.mubr.f32.mxu0 0.0
  %480 = vmatmul.mubr.f32.gmra.mrb[0].mxu0 %v168
  %v481 = vpop.f32.mrb[0].mxu0
  %v482 = vadd.f32 0.0, %v481
  %v483 = vpop.f32.mrb[0].mxu0
  %484 = vmatprep.mubr.f32.mxu0 0.0
  %485 = vmatmul.mubr.f32.gmra.mrb[0].mxu0 %v171
  %v486 = vpop.f32.mrb[0].mxu0
  %v487 = vadd.f32 0.0, %v486
  %v488 = vpop.f32.mrb[0].mxu0
  %489 = vmatprep.mubr.f32.mxu0 0.0
  %490 = vmatmul.mubr.f32.gmra.mrb[0].mxu0 %v174
  %v491 = vpop.f32.mrb[0].mxu0
  %v492 = vadd.f32 0.0, %v491
  %v493 = vpop.f32.mrb[0].mxu0
  %494 = vmatprep.mubr.f32.mxu0 0.0
  %495 = vmatmul.mubr.f32.gmra.mrb[0].mxu0 %v177
  %v496 = vpop.f32.mrb[0].mxu0
  %v497 = vadd.f32 0.0, %v496
  %v498 = vpop.f32.mrb[0].mxu0
  %499 = vmatprep.mubr.f32.mxu0 0.0
  %500 = vmatmul.mubr.f32.gmra.mrb[0].mxu0 %v180
  %v501 = vpop.f32.mrb[0].mxu0
  %v502 = vadd.f32 0.0, %v501
  %v503 = vpop.f32.mrb[0].mxu0
  %504 = vmatprep.mubr.f32.mxu0 0.0
  %505 = vmatmul.mubr.f32.gmra.mrb[0].mxu0 %v183
  %v506 = vpop.f32.mrb[0].mxu0
  %v507 = vadd.f32 0.0, %v506
  %v508 = vpop.f32.mrb[0].mxu0
  %509 = vmatprep.mubr.f32.mxu0 0.0
  %510 = vmatmul.mubr.f32.gmra.mrb[0].mxu0 %v186
  %v511 = vpop.f32.mrb[0].mxu0
  %v512 = vadd.f32 0.0, %v511
  %v513 = vpop.f32.mrb[0].mxu0
  %514 = vmatprep.mubr.f32.mxu0 0.0
  %515 = vmatmul.mubr.f32.gmra.mrb[0].mxu0 %v189
  %v516 = vpop.f32.mrb[0].mxu0
  %v517 = vadd.f32 0.0, %v516
  %v518 = vpop.f32.mrb[0].mxu0
  %519 = vmatprep.mubr.f32.mxu0 0.0
  %520 = vmatmul.mubr.f32.gmra.mrb[0].mxu0 %v192
  %v521 = vpop.f32.mrb[0].mxu0
  %v522 = vadd.f32 0.0, %v521
  %v523 = vpop.f32.mrb[0].mxu0
  %524 = vmatprep.mubr.f32.mxu0 0.0
  %525 = vmatmul.mubr.f32.gmra.mrb[0].mxu0 %v195
  %v526 = vpop.f32.mrb[0].mxu0
  %v527 = vadd.f32 0.0, %v526
  %v528 = vpop.f32.mrb[0].mxu0
  %529 = vmatprep.mubr.f32.mxu0 0.0
  %530 = vmatmul.mubr.f32.gmra.mrb[0].mxu0 %v198
  %v531 = vpop.f32.mrb[0].mxu0
  %v532 = vadd.f32 0.0, %v531
  %v533 = vpop.f32.mrb[0].mxu0
  %534 = vmatprep.mubr.f32.mxu0 0.0
  %535 = vmatmul.mubr.f32.gmra.mrb[0].mxu0 %v201
  %v536 = vpop.f32.mrb[0].mxu0
  %v537 = vadd.f32 0.0, %v536
  %v538 = vpop.f32.mrb[0].mxu0
  %539 = vmatprep.mubr.f32.mxu0 0.0
  %540 = vmatmul.mubr.f32.gmra.mrb[0].mxu0 %v204
  %v541 = vpop.f32.mrb[0].mxu0
  %v542 = vadd.f32 0.0, %v541
  %v543 = vpop.f32.mrb[0].mxu0
  %544 = vmatprep.mubr.f32.mxu0 0.0
  %545 = vmatmul.mubr.f32.gmra.mrb[0].mxu0 %v207
  %v546 = vpop.f32.mrb[0].mxu0
  %v547 = vadd.f32 0.0, %v546
  %v548 = vpop.f32.mrb[0].mxu0
  %549 = vmatprep.mubr.f32.mxu0 0.0
  %550 = vmatmul.mubr.f32.gmra.mrb[0].mxu0 %v210
  %v551 = vpop.f32.mrb[0].mxu0
  %v552 = vadd.f32 0.0, %v551
  %v553 = vpop.f32.mrb[0].mxu0
  %554 = vmatprep.mubr.f32.mxu0 0.0
  %555 = vmatmul.mubr.f32.gmra.mrb[0].mxu0 %v213
  %v556 = vpop.f32.mrb[0].mxu0
  %v557 = vadd.f32 0.0, %v556
  %v558 = vpop.f32.mrb[0].mxu0
  %559 = vmatprep.mubr.f32.mxu0 0.0
  %560 = vmatmul.mubr.f32.gmra.mrb[0].mxu0 %v216
  %v561 = vpop.f32.mrb[0].mxu0
  %v562 = vadd.f32 0.0, %v561
  %v563 = vpop.f32.mrb[0].mxu0
  %564 = vmatprep.mubr.f32.mxu0 0.0
  %565 = vmatmul.mubr.f32.gmra.mrb[0].mxu0 %v219
  %v566 = vpop.f32.mrb[0].mxu0
  %v567 = vadd.f32 0.0, %v566
  %v568 = vpop.f32.mrb[0].mxu0
  %569 = vmatprep.mubr.f32.mxu0 0.0
  %570 = vmatmul.mubr.f32.gmra.mrb[0].mxu0 %v222
  %v571 = vpop.f32.mrb[0].mxu0
  %v572 = vadd.f32 0.0, %v571
  %v573 = vpop.f32.mrb[0].mxu0
  %574 = vmatprep.mubr.f32.mxu0 0.0
  %575 = vmatmul.mubr.f32.gmra.mrb[0].mxu0 %v225
  %v576 = vpop.f32.mrb[0].mxu0
  %v577 = vadd.f32 0.0, %v576
  %v578 = vpop.f32.mrb[0].mxu0
  %579 = vmatprep.mubr.f32.mxu0 0.0
  %580 = vmatmul.mubr.f32.gmra.mrb[0].mxu0 %v228
  %v581 = vpop.f32.mrb[0].mxu0
  %v582 = vadd.f32 0.0, %v581
  %v583 = vpop.f32.mrb[0].mxu0
  %584 = vmatprep.mubr.f32.mxu0 0.0
  %585 = vmatmul.mubr.f32.gmra.mrb[0].mxu0 %v231
  %v586 = vpop.f32.mrb[0].mxu0
  %v587 = vadd.f32 0.0, %v586
  %v588 = vpop.f32.mrb[0].mxu0
  %589 = vmatprep.mubr.f32.mxu0 0.0
  %590 = vmatmul.mubr.f32.gmra.mrb[0].mxu0 %v234
  %v591 = vpop.f32.mrb[0].mxu0
  %v592 = vadd.f32 0.0, %v591
  %v593 = vpop.f32.mrb[0].mxu0
  %594 = vmatprep.mubr.f32.mxu0 0.0
  %595 = vmatmul.mubr.f32.gmra.mrb[0].mxu0 %v237
  %v596 = vpop.f32.mrb[0].mxu0
  %v597 = vadd.f32 0.0, %v596
  %v598 = vpop.f32.mrb[0].mxu0
  %599 = vmatprep.mubr.f32.mxu0 0.0
  %600 = vmatmul.mubr.f32.gmra.mrb[0].mxu0 %v240
  %v601 = vpop.f32.mrb[0].mxu0
  %v602 = vadd.f32 0.0, %v601
  %v603 = vpop.f32.mrb[0].mxu0
  %604 = vmatprep.mubr.f32.mxu0 0.0
  %605 = vmatmul.mubr.f32.gmra.mrb[0].mxu0 %v243
  %v606 = vpop.f32.mrb[0].mxu0
  %v607 = vadd.f32 0.0, %v606
  %v608 = vpop.f32.mrb[0].mxu0
  %609 = vmatprep.mubr.f32.mxu0 0.0
  %610 = vmatmul.mubr.f32.gmra.mrb[0].mxu0 %v246
  %v611 = vpop.f32.mrb[0].mxu0
  %v612 = vadd.f32 0.0, %v611
  %v613 = vpop.f32.mrb[0].mxu0
  %614 = vmatprep.mubr.f32.mxu0 0.0
  %615 = vmatmul.mubr.f32.gmra.mrb[0].mxu0 %v249
  %v616 = vpop.f32.mrb[0].mxu0
  %v617 = vadd.f32 0.0, %v616
  %v618 = vpop.f32.mrb[0].mxu0
  %619 = vmatprep.mubr.f32.mxu0 0.0
  %620 = vmatmul.mubr.f32.gmra.mrb[0].mxu0 %v252
  %v621 = vpop.f32.mrb[0].mxu0
  %v622 = vadd.f32 0.0, %v621
  %v623 = vpop.f32.mrb[0].mxu0
  %624 = vmatprep.mubr.f32.mxu0 0.0
  %625 = vmatmul.mubr.f32.gmra.mrb[0].mxu0 %v255
  %v626 = vpop.f32.mrb[0].mxu0
  %v627 = vadd.f32 0.0, %v626
  %v628 = vpop.f32.mrb[0].mxu0
  %629 = vmatprep.mubr.f32.mxu0 0.0
  %630 = vmatmul.mubr.f32.gmra.mrb[0].mxu0 %v258
  %v631 = vpop.f32.mrb[0].mxu0
  %v632 = vadd.f32 0.0, %v631
  %v633 = vpop.f32.mrb[0].mxu0
  %634 = vmatprep.mubr.f32.mxu0 0.0
  %635 = vmatmul.mubr.f32.gmra.mrb[0].mxu0 %v261
  %v636 = vpop.f32.mrb[0].mxu0
  %v637 = vadd.f32 0.0, %v636
  %v638 = vpop.f32.mrb[0].mxu0
  %639 = vmatprep.mubr.f32.mxu0 0.0
  %640 = vmatmul.mubr.f32.gmra.mrb[0].mxu0 %v264
  %v641 = vpop.f32.mrb[0].mxu0
  %v642 = vadd.f32 0.0, %v641
  %v643 = vpop.f32.mrb[0].mxu0
  %644 = vmatprep.mubr.f32.mxu0 0.0
  %645 = vmatmul.mubr.f32.gmra.mrb[0].mxu0 %v267
  %v646 = vpop.f32.mrb[0].mxu0
  %v647 = vadd.f32 0.0, %v646
  %v648 = vpop.f32.mrb[0].mxu0
  %649 = vmatprep.mubr.f32.mxu0 0.0
  %650 = vmatmul.mubr.f32.gmra.mrb[0].mxu0 %v270
  %v651 = vpop.f32.mrb[0].mxu0
  %v652 = vadd.f32 0.0, %v651
  %v653 = vpop.f32.mrb[0].mxu0
  %654 = vmatprep.mubr.f32.mxu0 0.0
  %655 = vmatmul.mubr.f32.gmra.mrb[0].mxu0 %v273
  %v656 = vpop.f32.mrb[0].mxu0
  %v657 = vadd.f32 0.0, %v656
  %v658 = vpop.f32.mrb[0].mxu0
  %659 = vdwg.mxu0
  %v660 = vld [vmem:[%s2] sm:$0x1]
  %v662 = vlaneseq
  %v663 = vshrl.u32 %v662, 7
  %v664 = vsub.s32 0, %v663
  %v665 = vrot.slane %v660, %v664
  %v667 = vmul.f32 %v342, %v665
  %v668 = vmul.f32 %v347, %v665
  %v669 = vmul.f32 %v352, %v665
  %v670 = vmul.f32 %v357, %v665
  %v671 = vmul.f32 %v362, %v665
  %v672 = vmul.f32 %v367, %v665
  %v673 = vmul.f32 %v372, %v665
  %v674 = vmul.f32 %v377, %v665
  %v675 = vmul.f32 %v382, %v665
  %v676 = vmul.f32 %v387, %v665
  %v677 = vmul.f32 %v392, %v665
  %v678 = vmul.f32 %v397, %v665
  %v679 = vmul.f32 %v402, %v665
  %v680 = vmul.f32 %v407, %v665
  %v681 = vmul.f32 %v412, %v665
  %v682 = vmul.f32 %v417, %v665
  %v683 = vmul.f32 %v422, %v665
  %v684 = vmul.f32 %v427, %v665
  %v685 = vmul.f32 %v432, %v665
  %v686 = vmul.f32 %v437, %v665
  %v687 = vmul.f32 %v442, %v665
  %v688 = vmul.f32 %v447, %v665
  %v689 = vmul.f32 %v452, %v665
  %v690 = vmul.f32 %v457, %v665
  %v691 = vmul.f32 %v462, %v665
  %v692 = vmul.f32 %v467, %v665
  %v693 = vmul.f32 %v472, %v665
  %v694 = vmul.f32 %v477, %v665
  %v695 = vmul.f32 %v482, %v665
  %v696 = vmul.f32 %v487, %v665
  %v697 = vmul.f32 %v492, %v665
  %v698 = vmul.f32 %v497, %v665
  %v699 = vmul.f32 %v502, %v665
  %v700 = vmul.f32 %v507, %v665
  %v701 = vmul.f32 %v512, %v665
  %v702 = vmul.f32 %v517, %v665
  %v703 = vmul.f32 %v522, %v665
  %v704 = vmul.f32 %v527, %v665
  %v705 = vmul.f32 %v532, %v665
  %v706 = vmul.f32 %v537, %v665
  %v707 = vmul.f32 %v542, %v665
  %v708 = vmul.f32 %v547, %v665
  %v709 = vmul.f32 %v552, %v665
  %v710 = vmul.f32 %v557, %v665
  %v711 = vmul.f32 %v562, %v665
  %v712 = vmul.f32 %v567, %v665
  %v713 = vmul.f32 %v572, %v665
  %v714 = vmul.f32 %v577, %v665
  %v715 = vmul.f32 %v582, %v665
  %v716 = vmul.f32 %v587, %v665
  %v717 = vmul.f32 %v592, %v665
  %v718 = vmul.f32 %v597, %v665
  %v719 = vmul.f32 %v602, %v665
  %v720 = vmul.f32 %v607, %v665
  %v721 = vmul.f32 %v612, %v665
  %v722 = vmul.f32 %v617, %v665
  %v723 = vmul.f32 %v622, %v665
  %v724 = vmul.f32 %v627, %v665
  %v725 = vmul.f32 %v632, %v665
  %v726 = vmul.f32 %v637, %v665
  %v727 = vmul.f32 %v642, %v665
  %v728 = vmul.f32 %v647, %v665
  %v729 = vmul.f32 %v652, %v665
  %v730 = vmul.f32 %v657, %v665
  %v731 = vld [vmem:[%s3] sm:$0x1]
  %v733 = vlaneseq
  %v734 = vshrl.u32 %v733, 7
  %v735 = vsub.s32 0, %v734
  %v736 = vrot.slane %v731, %v735
  %v738 = vadd.f32 %v667, %v736
  %v739 = vadd.f32 %v668, %v736
  %v740 = vadd.f32 %v669, %v736
  %v741 = vadd.f32 %v670, %v736
  %v742 = vadd.f32 %v671, %v736
  %v743 = vadd.f32 %v672, %v736
  %v744 = vadd.f32 %v673, %v736
  %v745 = vadd.f32 %v674, %v736
  %v746 = vadd.f32 %v675, %v736
  %v747 = vadd.f32 %v676, %v736
  %v748 = vadd.f32 %v677, %v736
  %v749 = vadd.f32 %v678, %v736
  %v750 = vadd.f32 %v679, %v736
  %v751 = vadd.f32 %v680, %v736
  %v752 = vadd.f32 %v681, %v736
  %v753 = vadd.f32 %v682, %v736
  %v754 = vadd.f32 %v683, %v736
  %v755 = vadd.f32 %v684, %v736
  %v756 = vadd.f32 %v685, %v736
  %v757 = vadd.f32 %v686, %v736
  %v758 = vadd.f32 %v687, %v736
  %v759 = vadd.f32 %v688, %v736
  %v760 = vadd.f32 %v689, %v736
  %v761 = vadd.f32 %v690, %v736
  %v762 = vadd.f32 %v691, %v736
  %v763 = vadd.f32 %v692, %v736
  %v764 = vadd.f32 %v693, %v736
  %v765 = vadd.f32 %v694, %v736
  %v766 = vadd.f32 %v695, %v736
  %v767 = vadd.f32 %v696, %v736
  %v768 = vadd.f32 %v697, %v736
  %v769 = vadd.f32 %v698, %v736
  %v770 = vadd.f32 %v699, %v736
  %v771 = vadd.f32 %v700, %v736
  %v772 = vadd.f32 %v701, %v736
  %v773 = vadd.f32 %v702, %v736
  %v774 = vadd.f32 %v703, %v736
  %v775 = vadd.f32 %v704, %v736
  %v776 = vadd.f32 %v705, %v736
  %v777 = vadd.f32 %v706, %v736
  %v778 = vadd.f32 %v707, %v736
  %v779 = vadd.f32 %v708, %v736
  %v780 = vadd.f32 %v709, %v736
  %v781 = vadd.f32 %v710, %v736
  %v782 = vadd.f32 %v711, %v736
  %v783 = vadd.f32 %v712, %v736
  %v784 = vadd.f32 %v713, %v736
  %v785 = vadd.f32 %v714, %v736
  %v786 = vadd.f32 %v715, %v736
  %v787 = vadd.f32 %v716, %v736
  %v788 = vadd.f32 %v717, %v736
  %v789 = vadd.f32 %v718, %v736
  %v790 = vadd.f32 %v719, %v736
  %v791 = vadd.f32 %v720, %v736
  %v792 = vadd.f32 %v721, %v736
  %v793 = vadd.f32 %v722, %v736
  %v794 = vadd.f32 %v723, %v736
  %v795 = vadd.f32 %v724, %v736
  %v796 = vadd.f32 %v725, %v736
  %v797 = vadd.f32 %v726, %v736
  %v798 = vadd.f32 %v727, %v736
  %v799 = vadd.f32 %v728, %v736
  %v800 = vadd.f32 %v729, %v736
  %v801 = vadd.f32 %v730, %v736
  %v802 = vxor.u32 %v738, 2147483648
  %v803 = vxor.u32 %v739, 2147483648
  %v804 = vxor.u32 %v740, 2147483648
  %v805 = vxor.u32 %v741, 2147483648
  %v806 = vxor.u32 %v742, 2147483648
  %v807 = vxor.u32 %v743, 2147483648
  %v808 = vxor.u32 %v744, 2147483648
  %v809 = vxor.u32 %v745, 2147483648
  %v810 = vxor.u32 %v746, 2147483648
  %v811 = vxor.u32 %v747, 2147483648
  %v812 = vxor.u32 %v748, 2147483648
  %v813 = vxor.u32 %v749, 2147483648
  %v814 = vxor.u32 %v750, 2147483648
  %v815 = vxor.u32 %v751, 2147483648
  %v816 = vxor.u32 %v752, 2147483648
  %v817 = vxor.u32 %v753, 2147483648
  %v818 = vxor.u32 %v754, 2147483648
  %v819 = vxor.u32 %v755, 2147483648
  %v820 = vxor.u32 %v756, 2147483648
  %v821 = vxor.u32 %v757, 2147483648
  %v822 = vxor.u32 %v758, 2147483648
  %v823 = vxor.u32 %v759, 2147483648
  %v824 = vxor.u32 %v760, 2147483648
  %v825 = vxor.u32 %v761, 2147483648
  %v826 = vxor.u32 %v762, 2147483648
  %v827 = vxor.u32 %v763, 2147483648
  %v828 = vxor.u32 %v764, 2147483648
  %v829 = vxor.u32 %v765, 2147483648
  %v830 = vxor.u32 %v766, 2147483648
  %v831 = vxor.u32 %v767, 2147483648
  %v832 = vxor.u32 %v768, 2147483648
  %v833 = vxor.u32 %v769, 2147483648
  %v834 = vxor.u32 %v770, 2147483648
  %v835 = vxor.u32 %v771, 2147483648
  %v836 = vxor.u32 %v772, 2147483648
  %v837 = vxor.u32 %v773, 2147483648
  %v838 = vxor.u32 %v774, 2147483648
  %v839 = vxor.u32 %v775, 2147483648
  %v840 = vxor.u32 %v776, 2147483648
  %v841 = vxor.u32 %v777, 2147483648
  %v842 = vxor.u32 %v778, 2147483648
  %v843 = vxor.u32 %v779, 2147483648
  %v844 = vxor.u32 %v780, 2147483648
  %v845 = vxor.u32 %v781, 2147483648
  %v846 = vxor.u32 %v782, 2147483648
  %v847 = vxor.u32 %v783, 2147483648
  %v848 = vxor.u32 %v784, 2147483648
  %v849 = vxor.u32 %v785, 2147483648
  %v850 = vxor.u32 %v786, 2147483648
  %v851 = vxor.u32 %v787, 2147483648
  %v852 = vxor.u32 %v788, 2147483648
  %v853 = vxor.u32 %v789, 2147483648
  %v854 = vxor.u32 %v790, 2147483648
  %v855 = vxor.u32 %v791, 2147483648
  %v856 = vxor.u32 %v792, 2147483648
  %v857 = vxor.u32 %v793, 2147483648
  %v858 = vxor.u32 %v794, 2147483648
  %v859 = vxor.u32 %v795, 2147483648
  %v860 = vxor.u32 %v796, 2147483648
  %v861 = vxor.u32 %v797, 2147483648
  %v862 = vxor.u32 %v798, 2147483648
  %v863 = vxor.u32 %v799, 2147483648
  %v864 = vxor.u32 %v800, 2147483648
  %v865 = vxor.u32 %v801, 2147483648
  %v866 = vmul.f32 %v802, 1.442695
  %v867 = vpow.pop %v866
  %v868 = vmul.f32 %v803, 1.442695
  %v869 = vpow.pop %v868
  %v870 = vmul.f32 %v804, 1.442695
  %v871 = vpow.pop %v870
  %v872 = vmul.f32 %v805, 1.442695
  %v873 = vpow.pop %v872
  %v874 = vmul.f32 %v806, 1.442695
  %v875 = vpow.pop %v874
  %v876 = vmul.f32 %v807, 1.442695
  %v877 = vpow.pop %v876
  %v878 = vmul.f32 %v808, 1.442695
  %v879 = vpow.pop %v878
  %v880 = vmul.f32 %v809, 1.442695
  %v881 = vpow.pop %v880
  %v882 = vmul.f32 %v810, 1.442695
  %v883 = vpow.pop %v882
  %v884 = vmul.f32 %v811, 1.442695
  %v885 = vpow.pop %v884
  %v886 = vmul.f32 %v812, 1.442695
  %v887 = vpow.pop %v886
  %v888 = vmul.f32 %v813, 1.442695
  %v889 = vpow.pop %v888
  %v890 = vmul.f32 %v814, 1.442695
  %v891 = vpow.pop %v890
  %v892 = vmul.f32 %v815, 1.442695
  %v893 = vpow.pop %v892
  %v894 = vmul.f32 %v816, 1.442695
  %v895 = vpow.pop %v894
  %v896 = vmul.f32 %v817, 1.442695
  %v897 = vpow.pop %v896
  %v898 = vmul.f32 %v818, 1.442695
  %v899 = vpow.pop %v898
  %v900 = vmul.f32 %v819, 1.442695
  %v901 = vpow.pop %v900
  %v902 = vmul.f32 %v820, 1.442695
  %v903 = vpow.pop %v902
  %v904 = vmul.f32 %v821, 1.442695
  %v905 = vpow.pop %v904
  %v906 = vmul.f32 %v822, 1.442695
  %v907 = vpow.pop %v906
  %v908 = vmul.f32 %v823, 1.442695
  %v909 = vpow.pop %v908
  %v910 = vmul.f32 %v824, 1.442695
  %v911 = vpow.pop %v910
  %v912 = vmul.f32 %v825, 1.442695
  %v913 = vpow.pop %v912
  %v914 = vmul.f32 %v826, 1.442695
  %v915 = vpow.pop %v914
  %v916 = vmul.f32 %v827, 1.442695
  %v917 = vpow.pop %v916
  %v918 = vmul.f32 %v828, 1.442695
  %v919 = vpow.pop %v918
  %v920 = vmul.f32 %v829, 1.442695
  %v921 = vpow.pop %v920
  %v922 = vmul.f32 %v830, 1.442695
  %v923 = vpow.pop %v922
  %v924 = vmul.f32 %v831, 1.442695
  %v925 = vpow.pop %v924
  %v926 = vmul.f32 %v832, 1.442695
  %v927 = vpow.pop %v926
  %v928 = vmul.f32 %v833, 1.442695
  %v929 = vpow.pop %v928
  %v930 = vmul.f32 %v834, 1.442695
  %v931 = vpow.pop %v930
  %v932 = vmul.f32 %v835, 1.442695
  %v933 = vpow.pop %v932
  %v934 = vmul.f32 %v836, 1.442695
  %v935 = vpow.pop %v934
  %v936 = vmul.f32 %v837, 1.442695
  %v937 = vpow.pop %v936
  %v938 = vmul.f32 %v838, 1.442695
  %v939 = vpow.pop %v938
  %v940 = vmul.f32 %v839, 1.442695
  %v941 = vpow.pop %v940
  %v942 = vmul.f32 %v840, 1.442695
  %v943 = vpow.pop %v942
  %v944 = vmul.f32 %v841, 1.442695
  %v945 = vpow.pop %v944
  %v946 = vmul.f32 %v842, 1.442695
  %v947 = vpow.pop %v946
  %v948 = vmul.f32 %v843, 1.442695
  %v949 = vpow.pop %v948
  %v950 = vmul.f32 %v844, 1.442695
  %v951 = vpow.pop %v950
  %v952 = vmul.f32 %v845, 1.442695
  %v953 = vpow.pop %v952
  %v954 = vmul.f32 %v846, 1.442695
  %v955 = vpow.pop %v954
  %v956 = vmul.f32 %v847, 1.442695
  %v957 = vpow.pop %v956
  %v958 = vmul.f32 %v848, 1.442695
  %v959 = vpow.pop %v958
  %v960 = vmul.f32 %v849, 1.442695
  %v961 = vpow.pop %v960
  %v962 = vmul.f32 %v850, 1.442695
  %v963 = vpow.pop %v962
  %v964 = vmul.f32 %v851, 1.442695
  %v965 = vpow.pop %v964
  %v966 = vmul.f32 %v852, 1.442695
  %v967 = vpow.pop %v966
  %v968 = vmul.f32 %v853, 1.442695
  %v969 = vpow.pop %v968
  %v970 = vmul.f32 %v854, 1.442695
  %v971 = vpow.pop %v970
  %v972 = vmul.f32 %v855, 1.442695
  %v973 = vpow.pop %v972
  %v974 = vmul.f32 %v856, 1.442695
  %v975 = vpow.pop %v974
  %v976 = vmul.f32 %v857, 1.442695
  %v977 = vpow.pop %v976
  %v978 = vmul.f32 %v858, 1.442695
  %v979 = vpow.pop %v978
  %v980 = vmul.f32 %v859, 1.442695
  %v981 = vpow.pop %v980
  %v982 = vmul.f32 %v860, 1.442695
  %v983 = vpow.pop %v982
  %v984 = vmul.f32 %v861, 1.442695
  %v985 = vpow.pop %v984
  %v986 = vmul.f32 %v862, 1.442695
  %v987 = vpow.pop %v986
  %v988 = vmul.f32 %v863, 1.442695
  %v989 = vpow.pop %v988
  %v990 = vmul.f32 %v864, 1.442695
  %v991 = vpow.pop %v990
  %v992 = vmul.f32 %v865, 1.442695
  %v993 = vpow.pop %v992
  %v994 = vadd.f32 %v867, 1.0
  %v995 = vadd.f32 %v869, 1.0
  %v996 = vadd.f32 %v871, 1.0
  %v997 = vadd.f32 %v873, 1.0
  %v998 = vadd.f32 %v875, 1.0
  %v999 = vadd.f32 %v877, 1.0
  %v1000 = vadd.f32 %v879, 1.0
  %v1001 = vadd.f32 %v881, 1.0
  %v1002 = vadd.f32 %v883, 1.0
  %v1003 = vadd.f32 %v885, 1.0
  %v1004 = vadd.f32 %v887, 1.0
  %v1005 = vadd.f32 %v889, 1.0
  %v1006 = vadd.f32 %v891, 1.0
  %v1007 = vadd.f32 %v893, 1.0
  %v1008 = vadd.f32 %v895, 1.0
  %v1009 = vadd.f32 %v897, 1.0
  %v1010 = vadd.f32 %v899, 1.0
  %v1011 = vadd.f32 %v901, 1.0
  %v1012 = vadd.f32 %v903, 1.0
  %v1013 = vadd.f32 %v905, 1.0
  %v1014 = vadd.f32 %v907, 1.0
  %v1015 = vadd.f32 %v909, 1.0
  %v1016 = vadd.f32 %v911, 1.0
  %v1017 = vadd.f32 %v913, 1.0
  %v1018 = vadd.f32 %v915, 1.0
  %v1019 = vadd.f32 %v917, 1.0
  %v1020 = vadd.f32 %v919, 1.0
  %v1021 = vadd.f32 %v921, 1.0
  %v1022 = vadd.f32 %v923, 1.0
  %v1023 = vadd.f32 %v925, 1.0
  %v1024 = vadd.f32 %v927, 1.0
  %v1025 = vadd.f32 %v929, 1.0
  %v1026 = vadd.f32 %v931, 1.0
  %v1027 = vadd.f32 %v933, 1.0
  %v1028 = vadd.f32 %v935, 1.0
  %v1029 = vadd.f32 %v937, 1.0
  %v1030 = vadd.f32 %v939, 1.0
  %v1031 = vadd.f32 %v941, 1.0
  %v1032 = vadd.f32 %v943, 1.0
  %v1033 = vadd.f32 %v945, 1.0
  %v1034 = vadd.f32 %v947, 1.0
  %v1035 = vadd.f32 %v949, 1.0
  %v1036 = vadd.f32 %v951, 1.0
  %v1037 = vadd.f32 %v953, 1.0
  %v1038 = vadd.f32 %v955, 1.0
  %v1039 = vadd.f32 %v957, 1.0
  %v1040 = vadd.f32 %v959, 1.0
  %v1041 = vadd.f32 %v961, 1.0
  %v1042 = vadd.f32 %v963, 1.0
  %v1043 = vadd.f32 %v965, 1.0
  %v1044 = vadd.f32 %v967, 1.0
  %v1045 = vadd.f32 %v969, 1.0
  %v1046 = vadd.f32 %v971, 1.0
  %v1047 = vadd.f32 %v973, 1.0
  %v1048 = vadd.f32 %v975, 1.0
  %v1049 = vadd.f32 %v977, 1.0
  %v1050 = vadd.f32 %v979, 1.0
  %v1051 = vadd.f32 %v981, 1.0
  %v1052 = vadd.f32 %v983, 1.0
  %v1053 = vadd.f32 %v985, 1.0
  %v1054 = vadd.f32 %v987, 1.0
  %v1055 = vadd.f32 %v989, 1.0
  %v1056 = vadd.f32 %v991, 1.0
  %v1057 = vadd.f32 %v993, 1.0
  %v1058 = vrcp.pop %v994
  %v1059 = vmul.f32 1.0, %v1058
  %v1060 = vrcp.pop %v995
  %v1061 = vmul.f32 1.0, %v1060
  %v1062 = vrcp.pop %v996
  %v1063 = vmul.f32 1.0, %v1062
  %v1064 = vrcp.pop %v997
  %v1065 = vmul.f32 1.0, %v1064
  %v1066 = vrcp.pop %v998
  %v1067 = vmul.f32 1.0, %v1066
  %v1068 = vrcp.pop %v999
  %v1069 = vmul.f32 1.0, %v1068
  %v1070 = vrcp.pop %v1000
  %v1071 = vmul.f32 1.0, %v1070
  %v1072 = vrcp.pop %v1001
  %v1073 = vmul.f32 1.0, %v1072
  %v1074 = vrcp.pop %v1002
  %v1075 = vmul.f32 1.0, %v1074
  %v1076 = vrcp.pop %v1003
  %v1077 = vmul.f32 1.0, %v1076
  %v1078 = vrcp.pop %v1004
  %v1079 = vmul.f32 1.0, %v1078
  %v1080 = vrcp.pop %v1005
  %v1081 = vmul.f32 1.0, %v1080
  %v1082 = vrcp.pop %v1006
  %v1083 = vmul.f32 1.0, %v1082
  %v1084 = vrcp.pop %v1007
  %v1085 = vmul.f32 1.0, %v1084
  %v1086 = vrcp.pop %v1008
  %v1087 = vmul.f32 1.0, %v1086
  %v1088 = vrcp.pop %v1009
  %v1089 = vmul.f32 1.0, %v1088
  %v1090 = vrcp.pop %v1010
  %v1091 = vmul.f32 1.0, %v1090
  %v1092 = vrcp.pop %v1011
  %v1093 = vmul.f32 1.0, %v1092
  %v1094 = vrcp.pop %v1012
  %v1095 = vmul.f32 1.0, %v1094
  %v1096 = vrcp.pop %v1013
  %v1097 = vmul.f32 1.0, %v1096
  %v1098 = vrcp.pop %v1014
  %v1099 = vmul.f32 1.0, %v1098
  %v1100 = vrcp.pop %v1015
  %v1101 = vmul.f32 1.0, %v1100
  %v1102 = vrcp.pop %v1016
  %v1103 = vmul.f32 1.0, %v1102
  %v1104 = vrcp.pop %v1017
  %v1105 = vmul.f32 1.0, %v1104
  %v1106 = vrcp.pop %v1018
  %v1107 = vmul.f32 1.0, %v1106
  %v1108 = vrcp.pop %v1019
  %v1109 = vmul.f32 1.0, %v1108
  %v1110 = vrcp.pop %v1020
  %v1111 = vmul.f32 1.0, %v1110
  %v1112 = vrcp.pop %v1021
  %v1113 = vmul.f32 1.0, %v1112
  %v1114 = vrcp.pop %v1022
  %v1115 = vmul.f32 1.0, %v1114
  %v1116 = vrcp.pop %v1023
  %v1117 = vmul.f32 1.0, %v1116
  %v1118 = vrcp.pop %v1024
  %v1119 = vmul.f32 1.0, %v1118
  %v1120 = vrcp.pop %v1025
  %v1121 = vmul.f32 1.0, %v1120
  %v1122 = vrcp.pop %v1026
  %v1123 = vmul.f32 1.0, %v1122
  %v1124 = vrcp.pop %v1027
  %v1125 = vmul.f32 1.0, %v1124
  %v1126 = vrcp.pop %v1028
  %v1127 = vmul.f32 1.0, %v1126
  %v1128 = vrcp.pop %v1029
  %v1129 = vmul.f32 1.0, %v1128
  %v1130 = vrcp.pop %v1030
  %v1131 = vmul.f32 1.0, %v1130
  %v1132 = vrcp.pop %v1031
  %v1133 = vmul.f32 1.0, %v1132
  %v1134 = vrcp.pop %v1032
  %v1135 = vmul.f32 1.0, %v1134
  %v1136 = vrcp.pop %v1033
  %v1137 = vmul.f32 1.0, %v1136
  %v1138 = vrcp.pop %v1034
  %v1139 = vmul.f32 1.0, %v1138
  %v1140 = vrcp.pop %v1035
  %v1141 = vmul.f32 1.0, %v1140
  %v1142 = vrcp.pop %v1036
  %v1143 = vmul.f32 1.0, %v1142
  %v1144 = vrcp.pop %v1037
  %v1145 = vmul.f32 1.0, %v1144
  %v1146 = vrcp.pop %v1038
  %v1147 = vmul.f32 1.0, %v1146
  %v1148 = vrcp.pop %v1039
  %v1149 = vmul.f32 1.0, %v1148
  %v1150 = vrcp.pop %v1040
  %v1151 = vmul.f32 1.0, %v1150
  %v1152 = vrcp.pop %v1041
  %v1153 = vmul.f32 1.0, %v1152
  %v1154 = vrcp.pop %v1042
  %v1155 = vmul.f32 1.0, %v1154
  %v1156 = vrcp.pop %v1043
  %v1157 = vmul.f32 1.0, %v1156
  %v1158 = vrcp.pop %v1044
  %v1159 = vmul.f32 1.0, %v1158
  %v1160 = vrcp.pop %v1045
  %v1161 = vmul.f32 1.0, %v1160
  %v1162 = vrcp.pop %v1046
  %v1163 = vmul.f32 1.0, %v1162
  %v1164 = vrcp.pop %v1047
  %v1165 = vmul.f32 1.0, %v1164
  %v1166 = vrcp.pop %v1048
  %v1167 = vmul.f32 1.0, %v1166
  %v1168 = vrcp.pop %v1049
  %v1169 = vmul.f32 1.0, %v1168
  %v1170 = vrcp.pop %v1050
  %v1171 = vmul.f32 1.0, %v1170
  %v1172 = vrcp.pop %v1051
  %v1173 = vmul.f32 1.0, %v1172
  %v1174 = vrcp.pop %v1052
  %v1175 = vmul.f32 1.0, %v1174
  %v1176 = vrcp.pop %v1053
  %v1177 = vmul.f32 1.0, %v1176
  %v1178 = vrcp.pop %v1054
  %v1179 = vmul.f32 1.0, %v1178
  %v1180 = vrcp.pop %v1055
  %v1181 = vmul.f32 1.0, %v1180
  %v1182 = vrcp.pop %v1056
  %v1183 = vmul.f32 1.0, %v1182
  %v1184 = vrcp.pop %v1057
  %v1185 = vmul.f32 1.0, %v1184
  %v1186 = vmul.f32 %v738, %v1059
  %v1187 = vmul.f32 %v739, %v1061
  %v1188 = vmul.f32 %v740, %v1063
  %v1189 = vmul.f32 %v741, %v1065
  %v1190 = vmul.f32 %v742, %v1067
  %v1191 = vmul.f32 %v743, %v1069
  %v1192 = vmul.f32 %v744, %v1071
  %v1193 = vmul.f32 %v745, %v1073
  %v1194 = vmul.f32 %v746, %v1075
  %v1195 = vmul.f32 %v747, %v1077
  %v1196 = vmul.f32 %v748, %v1079
  %v1197 = vmul.f32 %v749, %v1081
  %v1198 = vmul.f32 %v750, %v1083
  %v1199 = vmul.f32 %v751, %v1085
  %v1200 = vmul.f32 %v752, %v1087
  %v1201 = vmul.f32 %v753, %v1089
  %v1202 = vmul.f32 %v754, %v1091
  %v1203 = vmul.f32 %v755, %v1093
  %v1204 = vmul.f32 %v756, %v1095
  %v1205 = vmul.f32 %v757, %v1097
  %v1206 = vmul.f32 %v758, %v1099
  %v1207 = vmul.f32 %v759, %v1101
  %v1208 = vmul.f32 %v760, %v1103
  %v1209 = vmul.f32 %v761, %v1105
  %v1210 = vmul.f32 %v762, %v1107
  %v1211 = vmul.f32 %v763, %v1109
  %v1212 = vmul.f32 %v764, %v1111
  %v1213 = vmul.f32 %v765, %v1113
  %v1214 = vmul.f32 %v766, %v1115
  %v1215 = vmul.f32 %v767, %v1117
  %v1216 = vmul.f32 %v768, %v1119
  %v1217 = vmul.f32 %v769, %v1121
  %v1218 = vmul.f32 %v770, %v1123
  %v1219 = vmul.f32 %v771, %v1125
  %v1220 = vmul.f32 %v772, %v1127
  %v1221 = vmul.f32 %v773, %v1129
  %v1222 = vmul.f32 %v774, %v1131
  %v1223 = vmul.f32 %v775, %v1133
  %v1224 = vmul.f32 %v776, %v1135
  %v1225 = vmul.f32 %v777, %v1137
  %v1226 = vmul.f32 %v778, %v1139
  %v1227 = vmul.f32 %v779, %v1141
  %v1228 = vmul.f32 %v780, %v1143
  %v1229 = vmul.f32 %v781, %v1145
  %v1230 = vmul.f32 %v782, %v1147
  %v1231 = vmul.f32 %v783, %v1149
  %v1232 = vmul.f32 %v784, %v1151
  %v1233 = vmul.f32 %v785, %v1153
  %v1234 = vmul.f32 %v786, %v1155
  %v1235 = vmul.f32 %v787, %v1157
  %v1236 = vmul.f32 %v788, %v1159
  %v1237 = vmul.f32 %v789, %v1161
  %v1238 = vmul.f32 %v790, %v1163
  %v1239 = vmul.f32 %v791, %v1165
  %v1240 = vmul.f32 %v792, %v1167
  %v1241 = vmul.f32 %v793, %v1169
  %v1242 = vmul.f32 %v794, %v1171
  %v1243 = vmul.f32 %v795, %v1173
  %v1244 = vmul.f32 %v796, %v1175
  %v1245 = vmul.f32 %v797, %v1177
  %v1246 = vmul.f32 %v798, %v1179
  %v1247 = vmul.f32 %v799, %v1181
  %v1248 = vmul.f32 %v800, %v1183
  %v1249 = vmul.f32 %v801, %v1185
  %vm1250 = vcmask 261120
  %1251 = vst.msk [vmem:[%s4] sm:$0xff] %vm1250, %v1186
  %1252 = vst.msk [vmem:[%s4 + $0x8] sm:$0xff] %vm1250, %v1187
  %1253 = vst.msk [vmem:[%s4 + $0x10] sm:$0xff] %vm1250, %v1188
  %1254 = vst.msk [vmem:[%s4 + $0x18] sm:$0xff] %vm1250, %v1189
  %1255 = vst.msk [vmem:[%s4 + $0x20] sm:$0xff] %vm1250, %v1190
  %1256 = vst.msk [vmem:[%s4 + $0x28] sm:$0xff] %vm1250, %v1191
  %1257 = vst.msk [vmem:[%s4 + $0x30] sm:$0xff] %vm1250, %v1192
  %1258 = vst.msk [vmem:[%s4 + $0x38] sm:$0xff] %vm1250, %v1193
  %1259 = vst.msk [vmem:[%s4 + $0x40] sm:$0xff] %vm1250, %v1194
  %1260 = vst.msk [vmem:[%s4 + $0x48] sm:$0xff] %vm1250, %v1195
  %1261 = vst.msk [vmem:[%s4 + $0x50] sm:$0xff] %vm1250, %v1196
  %1262 = vst.msk [vmem:[%s4 + $0x58] sm:$0xff] %vm1250, %v1197
  %1263 = vst.msk [vmem:[%s4 + $0x60] sm:$0xff] %vm1250, %v1198
  %1264 = vst.msk [vmem:[%s4 + $0x68] sm:$0xff] %vm1250, %v1199
  %1265 = vst.msk [vmem:[%s4 + $0x70] sm:$0xff] %vm1250, %v1200
  %1266 = vst.msk [vmem:[%s4 + $0x78] sm:$0xff] %vm1250, %v1201
  %1267 = vst.msk [vmem:[%s4 + $0x80] sm:$0xff] %vm1250, %v1202
  %1268 = vst.msk [vmem:[%s4 + $0x88] sm:$0xff] %vm1250, %v1203
  %1269 = vst.msk [vmem:[%s4 + $0x90] sm:$0xff] %vm1250, %v1204
  %1270 = vst.msk [vmem:[%s4 + $0x98] sm:$0xff] %vm1250, %v1205
  %1271 = vst.msk [vmem:[%s4 + $0xa0] sm:$0xff] %vm1250, %v1206
  %1272 = vst.msk [vmem:[%s4 + $0xa8] sm:$0xff] %vm1250, %v1207
  %1273 = vst.msk [vmem:[%s4 + $0xb0] sm:$0xff] %vm1250, %v1208
  %1274 = vst.msk [vmem:[%s4 + $0xb8] sm:$0xff] %vm1250, %v1209
  %1275 = vst.msk [vmem:[%s4 + $0xc0] sm:$0xff] %vm1250, %v1210
  %1276 = vst.msk [vmem:[%s4 + $0xc8] sm:$0xff] %vm1250, %v1211
  %1277 = vst.msk [vmem:[%s4 + $0xd0] sm:$0xff] %vm1250, %v1212
  %1278 = vst.msk [vmem:[%s4 + $0xd8] sm:$0xff] %vm1250, %v1213
  %1279 = vst.msk [vmem:[%s4 + $0xe0] sm:$0xff] %vm1250, %v1214
  %1280 = vst.msk [vmem:[%s4 + $0xe8] sm:$0xff] %vm1250, %v1215
  %1281 = vst.msk [vmem:[%s4 + $0xf0] sm:$0xff] %vm1250, %v1216
  %1282 = vst.msk [vmem:[%s4 + $0xf8] sm:$0xff] %vm1250, %v1217
  %1283 = vst.msk [vmem:[%s4 + $0x100] sm:$0xff] %vm1250, %v1218
  %1284 = vst.msk [vmem:[%s4 + $0x108] sm:$0xff] %vm1250, %v1219
  %1285 = vst.msk [vmem:[%s4 + $0x110] sm:$0xff] %vm1250, %v1220
  %1286 = vst.msk [vmem:[%s4 + $0x118] sm:$0xff] %vm1250, %v1221
  %1287 = vst.msk [vmem:[%s4 + $0x120] sm:$0xff] %vm1250, %v1222
  %1288 = vst.msk [vmem:[%s4 + $0x128] sm:$0xff] %vm1250, %v1223
  %1289 = vst.msk [vmem:[%s4 + $0x130] sm:$0xff] %vm1250, %v1224
  %1290 = vst.msk [vmem:[%s4 + $0x138] sm:$0xff] %vm1250, %v1225
  %1291 = vst.msk [vmem:[%s4 + $0x140] sm:$0xff] %vm1250, %v1226
  %1292 = vst.msk [vmem:[%s4 + $0x148] sm:$0xff] %vm1250, %v1227
  %1293 = vst.msk [vmem:[%s4 + $0x150] sm:$0xff] %vm1250, %v1228
  %1294 = vst.msk [vmem:[%s4 + $0x158] sm:$0xff] %vm1250, %v1229
  %1295 = vst.msk [vmem:[%s4 + $0x160] sm:$0xff] %vm1250, %v1230
  %1296 = vst.msk [vmem:[%s4 + $0x168] sm:$0xff] %vm1250, %v1231
  %1297 = vst.msk [vmem:[%s4 + $0x170] sm:$0xff] %vm1250, %v1232
  %1298 = vst.msk [vmem:[%s4 + $0x178] sm:$0xff] %vm1250, %v1233
  %1299 = vst.msk [vmem:[%s4 + $0x180] sm:$0xff] %vm1250, %v1234
  %1300 = vst.msk [vmem:[%s4 + $0x188] sm:$0xff] %vm1250, %v1235
  %1301 = vst.msk [vmem:[%s4 + $0x190] sm:$0xff] %vm1250, %v1236
  %1302 = vst.msk [vmem:[%s4 + $0x198] sm:$0xff] %vm1250, %v1237
  %1303 = vst.msk [vmem:[%s4 + $0x1a0] sm:$0xff] %vm1250, %v1238
  %1304 = vst.msk [vmem:[%s4 + $0x1a8] sm:$0xff] %vm1250, %v1239
  %1305 = vst.msk [vmem:[%s4 + $0x1b0] sm:$0xff] %vm1250, %v1240
  %1306 = vst.msk [vmem:[%s4 + $0x1b8] sm:$0xff] %vm1250, %v1241
  %1307 = vst.msk [vmem:[%s4 + $0x1c0] sm:$0xff] %vm1250, %v1242
  %1308 = vst.msk [vmem:[%s4 + $0x1c8] sm:$0xff] %vm1250, %v1243
  %1309 = vst.msk [vmem:[%s4 + $0x1d0] sm:$0xff] %vm1250, %v1244
  %1310 = vst.msk [vmem:[%s4 + $0x1d8] sm:$0xff] %vm1250, %v1245
  %1311 = vst.msk [vmem:[%s4 + $0x1e0] sm:$0xff] %vm1250, %v1246
  %1312 = vst.msk [vmem:[%s4 + $0x1e8] sm:$0xff] %vm1250, %v1247
  %1313 = vst.msk [vmem:[%s4 + $0x1f0] sm:$0xff] %vm1250, %v1248
  %1314 = vst.msk [vmem:[%s4 + $0x1f8] sm:$0xff] %vm1250, %v1249
  // Predicated region
  $region18: #{tpu_custom_call.1} parent=0 // pred_check
    _
  $region19: #{tpu_custom_call.1} parent=0 // pred_check_branch
    %1316 = sbr.rel (0) target = $region21
  $region20: #{tpu_custom_call.1} parent=0 // pred_region
    _
  $region21: #{tpu_custom_call.1} parent=0 // pred_fallthru
    _
  // Predicated region
  $region22: #{tpu_custom_call.1} parent=0 // pred_check
    _
  $region23: #{tpu_custom_call.1} parent=0 // pred_check_branch
    %1318 = sbr.rel (0) target = $region25
  $region24: #{tpu_custom_call.1} parent=0 // pred_region
    _
  $region25: #{tpu_custom_call.1} parent=0 // pred_fallthru
    _

</llo_original>
